<compile_context>
chip_gen: v5e
topology: v5e:2x2
jax: 0.10.0
libtpu: 0.0.40
codegen_flags: <defaults>
</compile_context>

<pallas_src>
import functools

import jax
import jax.numpy as jnp
from jax import lax
from jax.experimental import pallas as pl
from jax.experimental.pallas import tpu as pltpu


def _round_up(n, m):
    return (n + m - 1) // m * m


def _kernel(ph_ref, plo_ref, wh_ref, wl_ref, h_ref, l_ref):
    # ph_ref : (1, Kh+1, Sh)  high-branch im2col patches (+ ones row for bias)
    # plo_ref: (1, Kl+1, Sl)  low-branch fused conv+pool patches (+ ones row)
    # wh_ref : (Ch, Kh+1)     flattened W_h with bias column
    # wl_ref : (Cl, Kl+1)     pool-averaged 4x4/stride-2 W_l with bias column
    # h_ref  : (1, Ch, Sh)    lane-dense, channel-major outputs
    # l_ref  : (1, Cl, Sl)
    h = jnp.dot(wh_ref[...], ph_ref[0], preferred_element_type=jnp.float32)
    h_ref[0] = jnp.maximum(h, 0.0).astype(h_ref.dtype)

    low = jnp.dot(wl_ref[...], plo_ref[0], preferred_element_type=jnp.float32)
    l_ref[0] = jnp.maximum(low, 0.0).astype(l_ref.dtype)


def _pick_batch_block(batch):
    """Fold the whole batch into one grid step on single-TC chips (v5e/v6e);
    keep >=2 parallel steps on multi-TC chips (v7x / megacore) so every
    TensorCore gets work."""
    try:
        kind = jax.devices()[0].device_kind.lower()
    except Exception:
        kind = ""
    single_tc = any(t in kind for t in ("v5 lite", "v5e", "v6 lite", "v6e"))
    if single_tc or batch < 2:
        return batch
    return max(1, batch // 2)


@functools.partial(jax.jit, static_argnames=("padding", "batch_block"))
def _oct_conv_in_block_impl(x_nchw, w_h, b_h, w_l, b_l, *, padding, batch_block):
    B, Cin, H, W = x_nchw.shape
    Ch, _, KH, KW = w_h.shape
    Cl = w_l.shape[0]
    H_out = H + 2 * padding - KH + 1   # stride=1, dilation=1
    W_out = W + 2 * padding - KW + 1
    assert H_out % 2 == 0 and W_out % 2 == 0, "avg_pool2d(2) needs even spatial size"
    assert B % batch_block == 0
    BB = batch_block
    nsteps = B // BB
    H2, W2 = H_out // 2, W_out // 2
    HW, HW4 = H_out * W_out, H2 * W2
    Kh = KH * KW * Cin                 # high-branch taps
    Kl = (KH + 1) * (KW + 1) * Cin     # low-branch (fused conv+pool) taps
    dtype = x_nchw.dtype

    # Lane widths per grid step (zero-padded up to a multiple of 128 so every
    # store in the kernel is an unmasked, lane-dense vst).
    Sh = _round_up(max(BB * HW, 128), 128)
    Sl = _round_up(max(BB * HW4, 128), 128)

    # --- input-side layout glue (plain XLA): NCHW -> NHWC + spatial padding --
    x = jnp.transpose(x_nchw, (0, 2, 3, 1))
    x_pad = jnp.pad(x, ((0, 0), (padding, padding), (padding, padding), (0, 0)))

    def build_patches(taps, n_taps, hw, lane_width):
        # taps: list of (B, hw, Cin) windows, tap-major / cin-minor ordering
        # (matches the (kh, kw, cin) flattening of the weights).
        p = jnp.stack(taps, axis=1)                        # (B, T, hw, Cin)
        p = jnp.transpose(p, (0, 1, 3, 2))                 # (B, T, Cin, hw)
        p = p.reshape(nsteps, BB, n_taps * Cin, hw)        # split batch
        p = jnp.transpose(p, (0, 2, 1, 3)).reshape(nsteps, n_taps * Cin, BB * hw)
        ones = jnp.ones((nsteps, 1, BB * hw), dtype)       # bias row
        p = jnp.concatenate([p, ones], axis=1)             # (nsteps, K+1, BB*hw)
        return jnp.pad(p, ((0, 0), (0, 0), (0, lane_width - BB * hw)))

    # High branch: ordinary KHxKW im2col over the stride-1 output grid.
    taps_h = [x_pad[:, kh:kh + H_out, kw:kw + W_out, :].reshape(B, HW, Cin)
              for kh in range(KH) for kw in range(KW)]
    ph = build_patches(taps_h, KH * KW, HW, Sh)            # (nsteps, Kh+1, Sh)

    # Low branch: conv3x3 + avg_pool(2) fused as a 4x4 / stride-2 conv, so its
    # patches are strided windows over the pooled output grid.
    taps_l = [x_pad[:, u:u + 2 * H2 - 1:2, v:v + 2 * W2 - 1:2, :].reshape(B, HW4, Cin)
              for u in range(KH + 1) for v in range(KW + 1)]
    plo = build_patches(taps_l, (KH + 1) * (KW + 1), HW4, Sl)  # (nsteps, Kl+1, Sl)

    # Flattened weights, (kh, kw, cin)-ordered, bias folded in as the column
    # matching the patches' ones row.
    wh_flat = jnp.transpose(w_h, (0, 2, 3, 1)).reshape(Ch, Kh)
    wh_ext = jnp.concatenate([wh_flat, b_h[:, None]], axis=1).astype(dtype)

    # Effective low-branch weights: avg_pool2(conv3x3(.)) == conv4x4/stride2
    # with the 3x3 kernel averaged over the four 2x2 pool shifts.
    wl_ohwi = jnp.transpose(w_l, (0, 2, 3, 1))             # (Cl, KH, KW, Cin)
    wz = jnp.pad(wl_ohwi, ((0, 0), (1, 1), (1, 1), (0, 0)))
    w_eff = 0.25 * (wz[:, 0:KH + 1, 0:KW + 1] + wz[:, 1:KH + 2, 0:KW + 1]
                    + wz[:, 0:KH + 1, 1:KW + 2] + wz[:, 1:KH + 2, 1:KW + 2])
    wl_ext = jnp.concatenate([w_eff.reshape(Cl, Kl), b_l[:, None]],
                             axis=1).astype(dtype)

    h_flat, l_flat = pl.pallas_call(
        _kernel,
        out_shape=(jax.ShapeDtypeStruct((nsteps, Ch, Sh), dtype),
                   jax.ShapeDtypeStruct((nsteps, Cl, Sl), dtype)),
        grid_spec=pltpu.PrefetchScalarGridSpec(
            num_scalar_prefetch=0,
            grid=(nsteps,),
            in_specs=[
                pl.BlockSpec((1, Kh + 1, Sh), lambda i: (i, 0, 0)),
                pl.BlockSpec((1, Kl + 1, Sl), lambda i: (i, 0, 0)),
                pl.BlockSpec((Ch, Kh + 1), lambda i: (0, 0)),
                pl.BlockSpec((Cl, Kl + 1), lambda i: (0, 0)),
            ],
            out_specs=[
                pl.BlockSpec((1, Ch, Sh), lambda i: (i, 0, 0)),
                pl.BlockSpec((1, Cl, Sl), lambda i: (i, 0, 0)),
            ],
        ),
        compiler_params=pltpu.CompilerParams(
            dimension_semantics=("parallel",),
            # Explicit budget: valid under v7x's 64 MiB physical VMEM as well
            # as v5e/v6e's 128 MiB (actual usage here is a few hundred KiB).
            vmem_limit_bytes=32 * 1024 * 1024,
        ),
    )(ph, plo, wh_ext, wl_ext)

    # Un-fold the batch from the lane axis and drop the lane padding.
    h = h_flat[:, :, :BB * HW].reshape(nsteps, Ch, BB, H_out, W_out)
    h = jnp.transpose(h, (0, 2, 1, 3, 4)).reshape(B, Ch, H_out, W_out)
    l = l_flat[:, :, :BB * HW4].reshape(nsteps, Cl, BB, H2, W2)
    l = jnp.transpose(l, (0, 2, 1, 3, 4)).reshape(B, Cl, H2, W2)
    return h, l


def oct_conv_in_block(x_nchw, w_h, b_h, w_l, b_l, *, padding=1, batch_block=None):
    """x_nchw: (B, Cin, H, W); w_*: (Cout*, Cin, KH, KW); b_*: (Cout*,)."""
    if batch_block is None:
        batch_block = _pick_batch_block(x_nchw.shape[0])
    return _oct_conv_in_block_impl(x_nchw, w_h, b_h, w_l, b_l,
                                   padding=padding, batch_block=batch_block)


def _reference(x, w_h, b_h, w_l, b_l, padding):
    """Pure-JAX reference (mirrors the PyTorch forward)."""
    def conv(w, b):
        y = lax.conv_general_dilated(
            x, w, window_strides=(1, 1),
            padding=[(padding, padding), (padding, padding)],
            dimension_numbers=("NCHW", "OIHW", "NCHW"))
        return y + b[None, :, None, None]

    h = jax.nn.relu(conv(w_h, b_h))
    lc = conv(w_l, b_l)
    B, C, Ho, Wo = lc.shape
    pooled = lc.reshape(B, C, Ho // 2, 2, Wo // 2, 2).mean(axis=(3, 5))
    l = jax.nn.relu(pooled)
    return h, l


if __name__ == "__main__":
    key = jax.random.PRNGKey(0)
    B, Cin, H, W = 2, 4, 16, 16
    out_channels = 8
    alpha_out = 0.5
    Ch = int((1.0 - alpha_out) * out_channels)   # 4 (high-frequency out)
    Cl = int(alpha_out * out_channels)           # 4 (low-frequency out)
    KH = KW = 3
    padding = 1

    k_x, k_wh, k_bh, k_wl, k_bl = jax.random.split(key, 5)
    x = jax.random.normal(k_x, (B, Cin, H, W), dtype=jnp.float32)
    w_h = jax.random.normal(k_wh, (Ch, Cin, KH, KW), dtype=jnp.float32) * 0.1
    b_h = jax.random.normal(k_bh, (Ch,), dtype=jnp.float32) * 0.1
    w_l = jax.random.normal(k_wl, (Cl, Cin, KH, KW), dtype=jnp.float32) * 0.1
    b_l = jax.random.normal(k_bl, (Cl,), dtype=jnp.float32) * 0.1

    h_out, l_out = oct_conv_in_block(x, w_h, b_h, w_l, b_l, padding=padding)
    jax.block_until_ready((h_out, l_out))

    h_ref, l_ref = _reference(x, w_h, b_h, w_l, b_l, padding)
    assert h_out.shape == (B, Ch, H, W), h_out.shape
    assert l_out.shape == (B, Cl, H // 2, W // 2), l_out.shape
    assert jnp.allclose(h_out, h_ref, atol=1e-4, rtol=1e-4)
    assert jnp.allclose(l_out, l_ref, atol=1e-4, rtol=1e-4)

    print("KERNEL_OK")
</pallas_src>

<mosaic_0001>
module attributes {stable_mosaic.version = 11 : i64} {
  func.func @_kernel(%arg0: i32, %arg1: memref<1x37x256xf32, #tpu.memory_space<vmem>>, %arg2: memref<1x65x128xf32, #tpu.memory_space<vmem>>, %arg3: memref<4x37xf32, #tpu.memory_space<vmem>>, %arg4: memref<4x65xf32, #tpu.memory_space<vmem>>, %arg5: memref<1x4x256xf32, #tpu.memory_space<vmem>>, %arg6: memref<1x4x128xf32, #tpu.memory_space<vmem>>) attributes {dimension_semantics = [#tpu.dimension_semantics<parallel>], iteration_bounds = array<i64: 2>, scalar_prefetch = 0 : i64, scratch_operands = 0 : i64, tpu.core_type = #tpu.core_type<tc>, window_params = [{transform_indices = @transform_0, window_bounds = array<i64: 1, 37, 256>}, {transform_indices = @transform_1, window_bounds = array<i64: 1, 65, 128>}, {pipeline_mode = #tpu.pipeline_mode<synchronous>, transform_indices = @transform_2, window_bounds = array<i64: 4, 37>}, {pipeline_mode = #tpu.pipeline_mode<synchronous>, transform_indices = @transform_3, window_bounds = array<i64: 4, 65>}, {transform_indices = @transform_4, window_bounds = array<i64: 1, 4, 256>}, {transform_indices = @transform_5, window_bounds = array<i64: 1, 4, 128>}]} {
    %c0 = arith.constant 0 : index
    %c0_0 = arith.constant 0 : index
    %0 = vector.load %arg3[%c0, %c0_0] : memref<4x37xf32, #tpu.memory_space<vmem>>, vector<4x37xf32>
    %c0_1 = arith.constant 0 : index
    %c0_2 = arith.constant 0 : index
    %c0_3 = arith.constant 0 : index
    %1 = vector.load %arg1[%c0_1, %c0_2, %c0_3] : memref<1x37x256xf32, #tpu.memory_space<vmem>>, vector<1x37x256xf32>
    %2 = vector.shape_cast %1 : vector<1x37x256xf32> to vector<37x256xf32>
    %cst = arith.constant dense<0.000000e+00> : vector<4x256xf32>
    %3 = tpu.matmul %0, %2, %cst {dimension_numbers = #tpu.dot_dimension_numbers<[1], [0], [0], [1], [0, 0, 1, 1], [], []>} : vector<4x37xf32>, vector<37x256xf32>, vector<4x256xf32> -> vector<4x256xf32>
    %cst_4 = arith.constant 0.000000e+00 : f32
    %4 = vector.broadcast %cst_4 : f32 to vector<4x256xf32>
    %5 = arith.maximumf %3, %4 : vector<4x256xf32>
    %c0_5 = arith.constant 0 : index
    %c0_6 = arith.constant 0 : index
    %c0_7 = arith.constant 0 : index
    %6 = vector.load %arg5[%c0_5, %c0_6, %c0_7] : memref<1x4x256xf32, #tpu.memory_space<vmem>>, vector<1x4x256xf32>
    %7 = vector.shape_cast %6 : vector<1x4x256xf32> to vector<4x256xf32>
    %8 = vector.shape_cast %5 : vector<4x256xf32> to vector<1x4x256xf32>
    tpu.vector_store %arg5[%c0_5, %c0_6, %c0_7], %8 {strides = array<i32>} : memref<1x4x256xf32, #tpu.memory_space<vmem>>, vector<1x4x256xf32>,
    %c0_8 = arith.constant 0 : index
    %c0_9 = arith.constant 0 : index
    %9 = vector.load %arg4[%c0_8, %c0_9] : memref<4x65xf32, #tpu.memory_space<vmem>>, vector<4x65xf32>
    %c0_10 = arith.constant 0 : index
    %c0_11 = arith.constant 0 : index
    %c0_12 = arith.constant 0 : index
    %10 = vector.load %arg2[%c0_10, %c0_11, %c0_12] : memref<1x65x128xf32, #tpu.memory_space<vmem>>, vector<1x65x128xf32>
    %11 = vector.shape_cast %10 : vector<1x65x128xf32> to vector<65x128xf32>
    %cst_13 = arith.constant dense<0.000000e+00> : vector<4x128xf32>
    %12 = tpu.matmul %9, %11, %cst_13 {dimension_numbers = #tpu.dot_dimension_numbers<[1], [0], [0], [1], [0, 0, 1, 1], [], []>} : vector<4x65xf32>, vector<65x128xf32>, vector<4x128xf32> -> vector<4x128xf32>
    %cst_14 = arith.constant 0.000000e+00 : f32
    %13 = vector.broadcast %cst_14 : f32 to vector<4x128xf32>
    %14 = arith.maximumf %12, %13 : vector<4x128xf32>
    %c0_15 = arith.constant 0 : index
    %c0_16 = arith.constant 0 : index
    %c0_17 = arith.constant 0 : index
    %15 = vector.load %arg6[%c0_15, %c0_16, %c0_17] : memref<1x4x128xf32, #tpu.memory_space<vmem>>, vector<1x4x128xf32>
    %16 = vector.shape_cast %15 : vector<1x4x128xf32> to vector<4x128xf32>
    %17 = vector.shape_cast %14 : vector<4x128xf32> to vector<1x4x128xf32>
    tpu.vector_store %arg6[%c0_15, %c0_16, %c0_17], %17 {strides = array<i32>} : memref<1x4x128xf32, #tpu.memory_space<vmem>>, vector<1x4x128xf32>,
    return
  }
  func.func @transform_0(%arg0: i32) -> (i32, i32, i32) {
    %c0_i32 = arith.constant 0 : i32
    %c0_i32_0 = arith.constant 0 : i32
    %c0_i32_1 = arith.constant 0 : i32
    return %arg0, %c0_i32, %c0_i32_0 : i32, i32, i32
  }
  func.func @transform_1(%arg0: i32) -> (i32, i32, i32) {
    %c0_i32 = arith.constant 0 : i32
    %c0_i32_0 = arith.constant 0 : i32
    %c0_i32_1 = arith.constant 0 : i32
    return %arg0, %c0_i32, %c0_i32_0 : i32, i32, i32
  }
  func.func @transform_2(%arg0: i32) -> (i32, i32) {
    %c0_i32 = arith.constant 0 : i32
    %c0_i32_0 = arith.constant 0 : i32
    %c0_i32_1 = arith.constant 0 : i32
    return %c0_i32, %c0_i32_0 : i32, i32
  }
  func.func @transform_3(%arg0: i32) -> (i32, i32) {
    %c0_i32 = arith.constant 0 : i32
    %c0_i32_0 = arith.constant 0 : i32
    %c0_i32_1 = arith.constant 0 : i32
    return %c0_i32, %c0_i32_0 : i32, i32
  }
  func.func @transform_4(%arg0: i32) -> (i32, i32, i32) {
    %c0_i32 = arith.constant 0 : i32
    %c0_i32_0 = arith.constant 0 : i32
    %c0_i32_1 = arith.constant 0 : i32
    return %arg0, %c0_i32, %c0_i32_0 : i32, i32, i32
  }
  func.func @transform_5(%arg0: i32) -> (i32, i32, i32) {
    %c0_i32 = arith.constant 0 : i32
    %c0_i32_0 = arith.constant 0 : i32
    %c0_i32_1 = arith.constant 0 : i32
    return %arg0, %c0_i32, %c0_i32_0 : i32, i32, i32
  }
}

</mosaic_0001>

<llo_original>
// kernel: _oct_conv_in_block_impl.1
$region0: #{_oct_conv_in_block_impl.1}
  #allocation0 [shape = 'u32[]', space=smem, size = 0x4, offset = 0x4, fixed_abs, tag = 'smem constant byte address 0x4 - core index']
  #allocation1 [shape = 'u32[72,128]{1,0:T(1,128)}', space=vmem, size = 0x9000, scoped, tag = 'internal scratch']
  %s0 = inlined_call_operand.vmem [shape: f32[2,37,256], index: 0, kind: input, shape index: {}]
  %s1 = inlined_call_operand.vmem [shape: f32[2,65,128], index: 1, kind: input, shape index: {}]
  %s2 = inlined_call_operand.vmem [shape: f32[4,37], index: 2, kind: input, shape index: {}]
  %s3 = inlined_call_operand.vmem [shape: f32[4,65], index: 3, kind: input, shape index: {}]
  %s4 = inlined_call_operand.vmem [shape: f32[2,4,256], index: 4, kind: output, shape index: {0}]
  %s5 = inlined_call_operand.vmem [shape: f32[2,4,128], index: 5, kind: output, shape index: {1}]
  %6 = xla_tuple %s4, %s5
  %s7 = sld [smem:[#allocation0]]
  $region57: #{_oct_conv_in_block_impl.1} parent=0
    _
  %s9 = ssub.s32 1, %s7
  %s10 = scalar_select 0, %s9, %s7
  loop: start=0, step=1, limit=4
  $region2: #{_oct_conv_in_block_impl.1} parent=0 // loop_pre_header
    _
  $region3: #{_oct_conv_in_block_impl.1} parent=0 // loop_header
    %s12 = sphi 0, %s16
    %p13 = scmp.ge.s32.totalorder %s12, 4
    %s22 = sphi 0, %s24
    %s25 = sphi 0, %s22
    %s26 = sphi 0, %s25
    %s42 = sphi 0, %s26
    %s48 = sphi 0, %s50
    %s51 = sphi 0, %s48
    %s52 = sphi 0, %s51
    %s68 = sphi 0, %s52
    %s72 = sphi 0, %s72
    %s74 = sphi 0, %s72
    %s75 = sphi 0, %s74
    %s89 = sphi 0, %s75
    %s93 = sphi 0, %s93
    %s95 = sphi 0, %s93
    %s96 = sphi 0, %s95
    %s110 = sphi 0, %s96
    %s116 = sphi 0, %s118
    %s119 = sphi 0, %s116
    %s120 = sphi 0, %s119
    %s136 = sphi 0, %s120
    %s142 = sphi 0, %s144
    %s145 = sphi 0, %s142
    %s146 = sphi 0, %s145
    %s162 = sphi 0, %s146
  $region4: #{_oct_conv_in_block_impl.1} parent=0 // loop_header_branch
    %15 = sbr.rel (%p13) target = $region8
  $region5: #{_oct_conv_in_block_impl.1} parent=0 // loop_body
    %s17 = ssub.s32 %s12, 1
    %s18 = ssub.s32 %s12, 2
    %s19 = sadd.s32 %s12, 1
    %s20 = ssub.s32 %s12, %s19
    %p21 = scmp.eq.s32.totalorder %s20, 0
    %s23 = sadd.s32 %s22, 1
    %s24 = scalar_select %p21, %s22, %s23
    %p27 = pneg %p21
    %p28 = scmp.eq.s32.totalorder %s12, 1
    %p29 = por %p27, %p28
    %p30 = scmp.ne.s32.totalorder %s22, %s25
    %p31 = scmp.eq.s32.totalorder %s12, 0
    %p32 = por %p30, %p31
    %p33 = scmp.ne.s32.totalorder %s22, %s25
    %p34 = scmp.eq.s32.totalorder %s17, 1
    %p35 = por %p33, %p34
    %p36 = scmp.ne.s32.totalorder %s25, %s26
    %p37 = scmp.eq.s32.totalorder %s17, 0
    %p38 = por %p36, %p37
    %p39 = scmp.ne.s32.totalorder %s25, %s26
    %p40 = scmp.eq.s32.totalorder %s18, 1
    %p41 = por %p39, %p40
    %p43 = scmp.ne.s32.totalorder %s26, %s42
    %p44 = scmp.eq.s32.totalorder %s18, 0
    %p45 = por %p43, %p44
    %s46 = ssub.s32 %s12, %s19
    %p47 = scmp.eq.s32.totalorder %s46, 0
    %s49 = sadd.s32 %s48, 1
    %s50 = scalar_select %p47, %s48, %s49
    %p53 = pneg %p47
    %p54 = scmp.eq.s32.totalorder %s12, 1
    %p55 = por %p53, %p54
    %p56 = scmp.ne.s32.totalorder %s48, %s51
    %p57 = scmp.eq.s32.totalorder %s12, 0
    %p58 = por %p56, %p57
    %p59 = scmp.ne.s32.totalorder %s48, %s51
    %p60 = scmp.eq.s32.totalorder %s17, 1
    %p61 = por %p59, %p60
    %p62 = scmp.ne.s32.totalorder %s51, %s52
    %p63 = scmp.eq.s32.totalorder %s17, 0
    %p64 = por %p62, %p63
    %p65 = scmp.ne.s32.totalorder %s51, %s52
    %p66 = scmp.eq.s32.totalorder %s18, 1
    %p67 = por %p65, %p66
    %p69 = scmp.ne.s32.totalorder %s52, %s68
    %p70 = scmp.eq.s32.totalorder %s18, 0
    %p71 = por %p69, %p70
    %s73 = sadd.s32 %s72, 1
    %p76 = scmp.eq.s32.totalorder %s12, 1
    %p77 = scmp.ne.s32.totalorder %s72, %s74
    %p78 = scmp.eq.s32.totalorder %s12, 0
    %p79 = por %p77, %p78
    %p80 = scmp.ne.s32.totalorder %s72, %s74
    %p81 = scmp.eq.s32.totalorder %s17, 1
    %p82 = por %p80, %p81
    %p83 = scmp.ne.s32.totalorder %s74, %s75
    %p84 = scmp.eq.s32.totalorder %s17, 0
    %p85 = por %p83, %p84
    %p86 = scmp.ne.s32.totalorder %s74, %s75
    %p87 = scmp.eq.s32.totalorder %s18, 1
    %p88 = por %p86, %p87
    %p90 = scmp.ne.s32.totalorder %s75, %s89
    %p91 = scmp.eq.s32.totalorder %s18, 0
    %p92 = por %p90, %p91
    %s94 = sadd.s32 %s93, 1
    %p97 = scmp.eq.s32.totalorder %s12, 1
    %p98 = scmp.ne.s32.totalorder %s93, %s95
    %p99 = scmp.eq.s32.totalorder %s12, 0
    %p100 = por %p98, %p99
    %p101 = scmp.ne.s32.totalorder %s93, %s95
    %p102 = scmp.eq.s32.totalorder %s17, 1
    %p103 = por %p101, %p102
    %p104 = scmp.ne.s32.totalorder %s95, %s96
    %p105 = scmp.eq.s32.totalorder %s17, 0
    %p106 = por %p104, %p105
    %p107 = scmp.ne.s32.totalorder %s95, %s96
    %p108 = scmp.eq.s32.totalorder %s18, 1
    %p109 = por %p107, %p108
    %p111 = scmp.ne.s32.totalorder %s96, %s110
    %p112 = scmp.eq.s32.totalorder %s18, 0
    %p113 = por %p111, %p112
    %s114 = ssub.s32 %s12, %s19
    %p115 = scmp.eq.s32.totalorder %s114, 0
    %s117 = sadd.s32 %s116, 1
    %s118 = scalar_select %p115, %s116, %s117
    %p121 = pneg %p115
    %p122 = scmp.eq.s32.totalorder %s12, 1
    %p123 = por %p121, %p122
    %p124 = scmp.ne.s32.totalorder %s116, %s119
    %p125 = scmp.eq.s32.totalorder %s12, 0
    %p126 = por %p124, %p125
    %p127 = scmp.ne.s32.totalorder %s116, %s119
    %p128 = scmp.eq.s32.totalorder %s17, 1
    %p129 = por %p127, %p128
    %p130 = scmp.ne.s32.totalorder %s119, %s120
    %p131 = scmp.eq.s32.totalorder %s17, 0
    %p132 = por %p130, %p131
    %p133 = scmp.ne.s32.totalorder %s119, %s120
    %p134 = scmp.eq.s32.totalorder %s18, 1
    %p135 = por %p133, %p134
    %p137 = scmp.ne.s32.totalorder %s120, %s136
    %p138 = scmp.eq.s32.totalorder %s18, 0
    %p139 = por %p137, %p138
    %s140 = ssub.s32 %s12, %s19
    %p141 = scmp.eq.s32.totalorder %s140, 0
    %s143 = sadd.s32 %s142, 1
    %s144 = scalar_select %p141, %s142, %s143
    %p147 = pneg %p141
    %p148 = scmp.eq.s32.totalorder %s12, 1
    %p149 = por %p147, %p148
    %p150 = scmp.ne.s32.totalorder %s142, %s145
    %p151 = scmp.eq.s32.totalorder %s12, 0
    %p152 = por %p150, %p151
    %p153 = scmp.ne.s32.totalorder %s142, %s145
    %p154 = scmp.eq.s32.totalorder %s17, 1
    %p155 = por %p153, %p154
    %p156 = scmp.ne.s32.totalorder %s145, %s146
    %p157 = scmp.eq.s32.totalorder %s17, 0
    %p158 = por %p156, %p157
    %p159 = scmp.ne.s32.totalorder %s145, %s146
    %p160 = scmp.eq.s32.totalorder %s18, 1
    %p161 = por %p159, %p160
    %p163 = scmp.ne.s32.totalorder %s146, %s162
    %p164 = scmp.eq.s32.totalorder %s18, 0
    %p165 = por %p163, %p164
    %p166 = scmp.le.s32.totalorder 1, %s12
    %p167 = scmp.lt.s32.totalorder %s12, 3
    %p168 = pnand %p166, %p167
    %p169 = pneg %p168
    // Predicated region
    $region9: #{_oct_conv_in_block_impl.1} parent=5 // pred_check
      _
    $region10: #{_oct_conv_in_block_impl.1} parent=5 // pred_check_branch
      %171 = sbr.rel (%p168) target = $region12
    $region11: #{_oct_conv_in_block_impl.1} parent=5 // pred_region
      %s172 = ssub.s32 %s12, 1
      // Predicated region
      $region13: #{_oct_conv_in_block_impl.1} parent=11 // pred_check
        %p173 = pneg %p85
      $region14: #{_oct_conv_in_block_impl.1} parent=11 // pred_check_branch
        %175 = sbr.rel (%p173) target = $region16
      $region15: #{_oct_conv_in_block_impl.1} parent=11 // pred_region
        _
      $region16: #{_oct_conv_in_block_impl.1} parent=11 // pred_fallthru
        _
      // Predicated region
      $region17: #{_oct_conv_in_block_impl.1} parent=11 // pred_check
        %p176 = pneg %p106
      $region18: #{_oct_conv_in_block_impl.1} parent=11 // pred_check_branch
        %178 = sbr.rel (%p176) target = $region20
      $region19: #{_oct_conv_in_block_impl.1} parent=11 // pred_region
        _
      $region20: #{_oct_conv_in_block_impl.1} parent=11 // pred_fallthru
        _
    $region12: #{_oct_conv_in_block_impl.1} parent=5 // pred_fallthru
      _
    %p179 = scmp.lt.s32.totalorder %s12, 2
    // Predicated region
    $region21: #{_oct_conv_in_block_impl.1} parent=5 // pred_check
      %p180 = pneg %p179
    $region22: #{_oct_conv_in_block_impl.1} parent=5 // pred_check_branch
      %182 = sbr.rel (%p180) target = $region24
    $region23: #{_oct_conv_in_block_impl.1} parent=5 // pred_region
      // Predicated region
      $region25: #{_oct_conv_in_block_impl.1} parent=23 // pred_check
        %p183 = pneg %p32
      $region26: #{_oct_conv_in_block_impl.1} parent=23 // pred_check_branch
        %185 = sbr.rel (%p183) target = $region28
      $region27: #{_oct_conv_in_block_impl.1} parent=23 // pred_region
        %p186 = scmp.lt.s32.totalorder %s12, 1
        %s187 = scalar_select %p186, %s12, 1
        %s188 = smul.addr %s187, 10
        %s189 = smul.addr %s188, 8
        %s190 = scalar_lea.vmem %s0, %s189
      $region28: #{_oct_conv_in_block_impl.1} parent=23 // pred_fallthru
        _
      // Predicated region
      $region29: #{_oct_conv_in_block_impl.1} parent=23 // pred_check
        %p191 = pneg %p58
      $region30: #{_oct_conv_in_block_impl.1} parent=23 // pred_check_branch
        %193 = sbr.rel (%p191) target = $region32
      $region31: #{_oct_conv_in_block_impl.1} parent=23 // pred_region
        %p194 = scmp.lt.s32.totalorder %s12, 1
        %s195 = scalar_select %p194, %s12, 1
        %s196 = smul.addr %s195, 9
        %s197 = smul.addr %s196, 8
        %s198 = scalar_lea.vmem %s1, %s197
      $region32: #{_oct_conv_in_block_impl.1} parent=23 // pred_fallthru
        _
    $region24: #{_oct_conv_in_block_impl.1} parent=5 // pred_fallthru
      _
    %p199 = scmp.le.s32.totalorder 1, %s12
    %p200 = scmp.lt.s32.totalorder %s12, 3
    %p201 = pnand %p199, %p200
    %p202 = pneg %p201
    // Predicated region
    $region33: #{_oct_conv_in_block_impl.1} parent=5 // pred_check
      _
    $region34: #{_oct_conv_in_block_impl.1} parent=5 // pred_check_branch
      %204 = sbr.rel (%p201) target = $region36
    $region35: #{_oct_conv_in_block_impl.1} parent=5 // pred_region
      %s205 = ssub.s32 %s12, 1
      %p206 = scmp.lt.s32.totalorder %s17, 1
      %s207 = scalar_select %p206, %s17, 1
      %s208 = smul.addr %s207, 10
      %s209 = smul.addr %s208, 8
      %s210 = scalar_lea.vmem %s0, %s209
      %p211 = pneg %p38
      %p212 = pneg %p35
      %p213 = scmp.lt.s32.totalorder %s17, 1
      %s214 = scalar_select %p213, %s17, 1
      %s215 = smul.addr %s214, 9
      %s216 = smul.addr %s215, 8
      %s217 = scalar_lea.vmem %s1, %s216
      %p218 = pneg %p64
      %p219 = pneg %p61
      %p220 = pneg %p85
      %p221 = pneg %p82
      %p222 = pneg %p106
      %p223 = pneg %p103
      %p224 = pneg %p132
      %p225 = pneg %p129
      %p226 = scmp.lt.s32.totalorder %s17, 1
      %s227 = scalar_select %p226, %s17, 1
      %s228 = smul.addr %s227, 2
      %s229 = smul.addr %s228, 4
      %s230 = scalar_lea.vmem %s4, %s229
      %p231 = pneg %p158
      %p232 = pneg %p155
      %p233 = scmp.lt.s32.totalorder %s17, 1
      %s234 = scalar_select %p233, %s17, 1
      %s235 = smul.addr %s234, 4
      %s236 = scalar_lea.vmem %s5, %s235
      %p237 = scmp.lt.s32.totalorder %s17, 1
      %s238 = scalar_select %p237, %s17, 1
      %s239 = smul.addr %s238, 10
      %s240 = smul.addr %s239, 8
      %s241 = scalar_lea.vmem %s0, %s240
      %p242 = scmp.lt.s32.totalorder %s17, 1
      %s243 = scalar_select %p242, %s17, 1
      %s244 = smul.addr %s243, 9
      %s245 = smul.addr %s244, 8
      %s246 = scalar_lea.vmem %s1, %s245
      %p247 = scmp.lt.s32.totalorder %s17, 1
      %s248 = scalar_select %p247, %s17, 1
      %s249 = smul.addr %s248, 2
      %s250 = smul.addr %s249, 4
      %s251 = scalar_lea.vmem %s4, %s250
      %p252 = scmp.lt.s32.totalorder %s17, 1
      %s253 = scalar_select %p252, %s17, 1
      %s254 = smul.addr %s253, 4
      %s255 = scalar_lea.vmem %s5, %s254
      %v256 = vld [vmem:[%s2] sm:$0xf]
      %v257 = vld [vmem:[%s241] sm:$0xff]
      %v258 = vld [vmem:[%s241 + $0x8] sm:$0xff]
      %v259 = vld [vmem:[%s241 + $0x10] sm:$0xff]
      %v260 = vld [vmem:[%s241 + $0x18] sm:$0xff]
      %v261 = vld [vmem:[%s241 + $0x20] sm:$0xff]
      %v262 = vld [vmem:[%s241 + $0x28] sm:$0xff]
      %v263 = vld [vmem:[%s241 + $0x30] sm:$0xff]
      %v264 = vld [vmem:[%s241 + $0x38] sm:$0xff]
      %v265 = vld [vmem:[%s241 + $0x40] sm:$0x1f]
      %v266 = vld [vmem:[%s241 + $0x48] sm:$0x1f]
      %vm267 = vcmask 302080
      %v269 = vsel %vm267, %v256, 0
      %vm271 = vcmask 1044480
      %v273 = vsel %vm271, %v265, 0
      %v276 = vsel %vm271, %v266, 0
      %278 = vmatpush.msra.mxu0 0.0
      %279 = vmatpush.msra.mxu0 0.0
      %280 = vmatpush.msra.mxu0 0.0
      %281 = vmatpush.msra.mxu0 0.0
      %282 = vmatpush.msra.mxu0 0.0
      %283 = vmatpush.msra.mxu0 0.0
      %284 = vmatpush.msra.mxu0 0.0
      %285 = vmatpush.msra.mxu0 0.0
      %286 = vmatpush.msra.mxu0 0.0
      %287 = vmatpush.msra.mxu0 0.0
      %288 = vmatpush.msra.mxu0 0.0
      %289 = vmatpush.msra.mxu0 %v273
      %290 = vmatpush.msra.mxu0 %v263
      %291 = vmatpush.msra.mxu0 %v261
      %292 = vmatpush.msra.mxu0 %v259
      %293 = vmatpush.msra.mxu0 %v257
      %294 = vmatmul.f32.gmra.mxu0 %v269
      %v295 = vpop.f32.mrf.mxu0
      %v296 = vadd.f32 0.0, %v295
      %297 = vdwg.mxu0
      %298 = vmatpush.msra.mxu0 0.0
      %299 = vmatpush.msra.mxu0 0.0
      %300 = vmatpush.msra.mxu0 0.0
      %301 = vmatpush.msra.mxu0 0.0
      %302 = vmatpush.msra.mxu0 0.0
      %303 = vmatpush.msra.mxu0 0.0
      %304 = vmatpush.msra.mxu0 0.0
      %305 = vmatpush.msra.mxu0 0.0
      %306 = vmatpush.msra.mxu0 0.0
      %307 = vmatpush.msra.mxu0 0.0
      %308 = vmatpush.msra.mxu0 0.0
      %309 = vmatpush.msra.mxu0 %v276
      %310 = vmatpush.msra.mxu0 %v264
      %311 = vmatpush.msra.mxu0 %v262
      %312 = vmatpush.msra.mxu0 %v260
      %313 = vmatpush.msra.mxu0 %v258
      %314 = vmatmul.f32.gmra.mxu0 %v269
      %v315 = vpop.f32.mrf.mxu0
      %v316 = vadd.f32 0.0, %v315
      %317 = vdwg.mxu0
      %v318 = vmax.f32 %v296, 0.0
      %v319 = vmax.f32 %v316, 0.0
      %v322 = vrot.slane %v319, 4
      %vm323 = vcmask 1043456
      %v324 = vsel %vm323, %v318, %v322
      %326 = vst [vmem:[%s251] sm:$0xff] %v324
      %v327 = vld [vmem:[%s3] sm:$0xf]
      %v328 = vld [vmem:[%s246] sm:$0xff]
      %v329 = vld [vmem:[%s246 + $0x8] sm:$0xff]
      %v330 = vld [vmem:[%s246 + $0x10] sm:$0xff]
      %v331 = vld [vmem:[%s246 + $0x18] sm:$0xff]
      %v332 = vld [vmem:[%s246 + $0x20] sm:$0xff]
      %v333 = vld [vmem:[%s246 + $0x28] sm:$0xff]
      %v334 = vld [vmem:[%s246 + $0x30] sm:$0xff]
      %v335 = vld [vmem:[%s246 + $0x38] sm:$0xff]
      %v336 = vld [vmem:[%s246 + $0x40] sm:$0x1]
      %vm337 = vcmask 531456
      %v339 = vsel %vm337, %v327, 0
      %vm341 = vcmask 1040384
      %v343 = vsel %vm341, %v336, 0
      %345 = vmatpush.msra.mxu0 0.0
      %346 = vmatpush.msra.mxu0 0.0
      %347 = vmatpush.msra.mxu0 0.0
      %348 = vmatpush.msra.mxu0 0.0
      %349 = vmatpush.msra.mxu0 0.0
      %350 = vmatpush.msra.mxu0 0.0
      %351 = vmatpush.msra.mxu0 0.0
      %352 = vmatpush.msra.mxu0 %v343
      %353 = vmatpush.msra.mxu0 %v335
      %354 = vmatpush.msra.mxu0 %v334
      %355 = vmatpush.msra.mxu0 %v333
      %356 = vmatpush.msra.mxu0 %v332
      %357 = vmatpush.msra.mxu0 %v331
      %358 = vmatpush.msra.mxu0 %v330
      %359 = vmatpush.msra.mxu0 %v329
      %360 = vmatpush.msra.mxu0 %v328
      %361 = vmatmul.f32.gmra.mxu0 %v339
      %v362 = vpop.f32.mrf.mxu0
      %v363 = vadd.f32 0.0, %v362
      %364 = vdwg.mxu0
      %v365 = vmax.f32 %v363, 0.0
      %366 = vst [vmem:[%s255] sm:$0xf] %v365
      %p367 = scmp.lt.s32.totalorder %s17, 1
      %s368 = scalar_select %p367, %s17, 1
      %s369 = smul.addr %s368, 2
      %s370 = smul.addr %s369, 4
      %s371 = scalar_lea.vmem %s4, %s370
      %p372 = scmp.lt.s32.totalorder %s17, 1
      %s373 = scalar_select %p372, %s17, 1
      %s374 = smul.addr %s373, 4
      %s375 = scalar_lea.vmem %s5, %s374
      // Predicated region
      $region37: #{_oct_conv_in_block_impl.1} parent=35 // pred_check
        %p376 = pneg %p129
      $region38: #{_oct_conv_in_block_impl.1} parent=35 // pred_check_branch
        %378 = sbr.rel (%p376) target = $region40
      $region39: #{_oct_conv_in_block_impl.1} parent=35 // pred_region
        _
      $region40: #{_oct_conv_in_block_impl.1} parent=35 // pred_fallthru
        _
      // Predicated region
      $region41: #{_oct_conv_in_block_impl.1} parent=35 // pred_check
        %p379 = pneg %p155
      $region42: #{_oct_conv_in_block_impl.1} parent=35 // pred_check_branch
        %381 = sbr.rel (%p379) target = $region44
      $region43: #{_oct_conv_in_block_impl.1} parent=35 // pred_region
        _
      $region44: #{_oct_conv_in_block_impl.1} parent=35 // pred_fallthru
        _
    $region36: #{_oct_conv_in_block_impl.1} parent=5 // pred_fallthru
      _
    %p382 = scmp.le.s32.totalorder 2, %s12
    // Predicated region
    $region45: #{_oct_conv_in_block_impl.1} parent=5 // pred_check
      %p383 = pneg %p382
    $region46: #{_oct_conv_in_block_impl.1} parent=5 // pred_check_branch
      %385 = sbr.rel (%p383) target = $region48
    $region47: #{_oct_conv_in_block_impl.1} parent=5 // pred_region
      %s386 = ssub.s32 %s12, 2
      // Predicated region
      $region49: #{_oct_conv_in_block_impl.1} parent=47 // pred_check
        %p387 = pneg %p135
      $region50: #{_oct_conv_in_block_impl.1} parent=47 // pred_check_branch
        %389 = sbr.rel (%p387) target = $region52
      $region51: #{_oct_conv_in_block_impl.1} parent=47 // pred_region
        %p390 = scmp.lt.s32.totalorder %s18, 1
        %s391 = scalar_select %p390, %s18, 1
        %s392 = smul.addr %s391, 2
        %s393 = smul.addr %s392, 4
        %s394 = scalar_lea.vmem %s4, %s393
      $region52: #{_oct_conv_in_block_impl.1} parent=47 // pred_fallthru
        _
      // Predicated region
      $region53: #{_oct_conv_in_block_impl.1} parent=47 // pred_check
        %p395 = pneg %p161
      $region54: #{_oct_conv_in_block_impl.1} parent=47 // pred_check_branch
        %397 = sbr.rel (%p395) target = $region56
      $region55: #{_oct_conv_in_block_impl.1} parent=47 // pred_region
        %p398 = scmp.lt.s32.totalorder %s18, 1
        %s399 = scalar_select %p398, %s18, 1
        %s400 = smul.addr %s399, 4
        %s401 = scalar_lea.vmem %s5, %s400
      $region56: #{_oct_conv_in_block_impl.1} parent=47 // pred_fallthru
        _
    $region48: #{_oct_conv_in_block_impl.1} parent=5 // pred_fallthru
      _
  $region6: #{_oct_conv_in_block_impl.1} parent=0 // loop_footer
    %s16 = sadd.s32 1, %s12
  $region7: #{_oct_conv_in_block_impl.1} parent=0 // loop_footer_branch
    %11 = sbr.rel target = $region3
  $region8: #{_oct_conv_in_block_impl.1} parent=0 // loop_exit
    _

</llo_original>
